<compile_context>
chip_gen: v5e
topology: v5e:2x2
jax: 0.10.0
libtpu: 0.0.40
codegen_flags: <defaults>
</compile_context>

<pallas_src>
import numpy as np
import jax
import jax.numpy as jnp
from jax.experimental import pallas as pl
from jax.experimental.pallas import tpu as pltpu


# --------------------------------------------------------------------------- #
# helpers
# --------------------------------------------------------------------------- #
def _round_up(v, m):
    return ((v + m - 1) // m) * m


def _largest_divisor_leq(q, cap):
    """Largest d dividing q with d <= cap (>= 1)."""
    cap = max(1, min(int(q), int(cap)))
    for d in range(cap, 0, -1):
        if q % d == 0:
            return d
    return 1


def _vmem_capacity_bytes():
    try:
        return int(pltpu.get_tpu_info().vmem_capacity_bytes)
    except Exception:
        return 64 * 1024 * 1024  # conservative (v7x-sized) fallback


# --------------------------------------------------------------------------- #
# kernels
# --------------------------------------------------------------------------- #
def _single_block_kernel(x_ref, wt_ref, b_ref, o_ref):
    """Whole problem resident in VMEM: one matmul + bias, no grid."""
    xv = x_ref[...].astype(wt_ref.dtype)          # no-op for f32, bf16 cast otherwise
    o_ref[...] = (jnp.dot(xv, wt_ref[...], preferred_element_type=jnp.float32)
                  + b_ref[...]).astype(o_ref.dtype)


def _linear_kernel(x_ref, wt_ref, b_ref, o_ref):
    """One (tm, tn) output tile; K streamed over the last grid axis.

    The f32 output tile is the accumulator (resident across k); bias is added
    once at finalize.  No separate VMEM scratch.
    """
    k = pl.program_id(2)

    @pl.when(k == 0)
    def _():
        o_ref[...] = jnp.zeros_like(o_ref)

    o_ref[...] += jnp.dot(x_ref[...].astype(wt_ref.dtype), wt_ref[...],
                          preferred_element_type=jnp.float32)

    @pl.when(k == pl.num_programs(2) - 1)
    def _():
        o_ref[...] += b_ref[...]


# --------------------------------------------------------------------------- #
# init-time parameter preparation (padding / transpose / emb-fold done ONCE)
# --------------------------------------------------------------------------- #
def prepare_logistic_params(weight_t, bias, emb=None, *, weight_dtype=jnp.float32):
    """Pad the pre-transposed logistic weight/bias to TPU tile multiples and
    (optionally) fold the EmbeddingLayer per-column scale into the weight.

    weight_t: (K, N) f32   pre-transposed nn.Linear weight (K = nb_nodes * C)
    bias:     (N,)   f32
    emb:      optional (nb_nodes, emb_size) EmbeddingLayer parameter
              (then K must equal nb_nodes * emb_size)
    """
    K, N = weight_t.shape
    if emb is not None:
        emb_flat = emb.reshape(-1, 1).astype(jnp.float32)        # (K, 1)
        assert emb_flat.shape[0] == K, (emb_flat.shape, K)
        weight_t = emb_flat * weight_t                            # fold x*e into W
    Kp = _round_up(K, 128)
    Np = _round_up(N, 128)
    w_p = jnp.pad(weight_t, ((0, Kp - K), (0, Np - N))).astype(weight_dtype)
    b_p = jnp.pad(bias.reshape(1, N), ((0, 0), (0, Np - N))).astype(jnp.float32)
    return {"w": w_p, "b": b_p, "K": K, "N": N}


# --------------------------------------------------------------------------- #
# forward
# --------------------------------------------------------------------------- #
def pallas_linear(x_flat, params, *, max_single_block_bytes=8 * 1024 * 1024,
                  tile_caps=None):
    """y = x_flat @ W_padded + b   (emb already folded into W at init).

    x_flat: (B, K) f32
    """
    w_p, b_p = params["w"], params["b"]
    K, N = params["K"], params["N"]
    Kp, Np = w_p.shape
    B, Kx = x_flat.shape
    assert Kx == K, (Kx, K)

    # Hardware-aware tile caps / VMEM limit.
    vmem_cap = _vmem_capacity_bytes()
    big_vmem = vmem_cap >= 100 * 1024 * 1024          # v5e/v6e: 128 MiB physical
    if tile_caps is not None:
        tm_cap, tk_cap, tn_cap = tile_caps
    elif big_vmem:
        tm_cap, tk_cap, tn_cap = 256, 2048, 512
    else:                                             # v7x: 64 MiB
        tm_cap, tk_cap, tn_cap = 256, 1024, 512
    vmem_limit = (64 if big_vmem else 32) * 1024 * 1024

    w_bytes = jnp.dtype(w_p.dtype).itemsize
    Mp_fast = _round_up(max(B, 1), 8)

    # ---- single-block fast path: whole problem resident in VMEM -------------
    fast_bytes = (Mp_fast * Kp * 4 + Kp * Np * w_bytes + Mp_fast * Np * 4 + Np * 4)
    if fast_bytes <= max_single_block_bytes:
        x_p = jnp.pad(x_flat, ((0, Mp_fast - B), (0, Kp - K)))
        out = pl.pallas_call(
            _single_block_kernel,
            out_shape=jax.ShapeDtypeStruct((Mp_fast, Np), jnp.float32),
        )(x_p, w_p, b_p)
        return out[:B, :N]

    # ---- tiled K-last reduction grid ----------------------------------------
    tm = min(_round_up(max(B, 1), 8), tm_cap)
    Mp = _round_up(B, tm)
    tk = 128 * _largest_divisor_leq(Kp // 128, tk_cap // 128)   # zero K padding
    tn = 128 * _largest_divisor_leq(Np // 128, tn_cap // 128)   # zero N padding
    gm, gn, gk = Mp // tm, Np // tn, Kp // tk

    x_p = jnp.pad(x_flat, ((0, Mp - B), (0, Kp - K)))

    if gk >= 3:
        # Triple-buffer both streamed operands to hide per-step DMA latency.
        x_spec = pl.BlockSpec((tm, tk), lambda i, j, k: (i, k),
                              pipeline_mode=pl.Buffered(3))
        w_spec = pl.BlockSpec((tk, tn), lambda i, j, k: (k, j),
                              pipeline_mode=pl.Buffered(3))
    else:
        x_spec = pl.BlockSpec((tm, tk), lambda i, j, k: (i, k))
        w_spec = pl.BlockSpec((tk, tn), lambda i, j, k: (k, j))
    b_spec = pl.BlockSpec((1, tn), lambda i, j, k: (0, j))

    out = pl.pallas_call(
        _linear_kernel,
        out_shape=jax.ShapeDtypeStruct((Mp, Np), jnp.float32),
        grid=(gm, gn, gk),
        in_specs=[x_spec, w_spec, b_spec],
        out_specs=pl.BlockSpec((tm, tn), lambda i, j, k: (i, j)),
        compiler_params=pltpu.CompilerParams(
            dimension_semantics=("parallel", "parallel", "arbitrary"),
            vmem_limit_bytes=vmem_limit,
        ),
    )(x_p, w_p, b_p)

    return out[:B, :N]


def graph_network_forward(x, params, **kwargs):
    """GraphNetwork.forward for the channels=[] configuration.

    x:      (B, nb_nodes, C) f32
    params: output of prepare_logistic_params (emb already folded into weight)
    """
    B, nb_nodes, C = x.shape
    K = params["K"]
    assert K % nb_nodes == 0, (K, nb_nodes)
    C_expected = K // nb_nodes
    if C != C_expected:
        # EmbeddingLayer broadcast case: (B, n, 1) * (n, e) -> (B, n, e); the per
        # column emb scale itself is folded into the weight at init.
        assert C == 1, (C, C_expected)
        x = jnp.broadcast_to(x, (B, nb_nodes, C_expected))
    x_flat = x.reshape(B, K)                      # same row-major layout as torch .view
    return pallas_linear(x_flat, params, **kwargs)


def make_params(key, in_dim, out_dim):
    """nn.Linear default init (uniform +/- 1/sqrt(fan_in)); weight stored
    PRE-TRANSPOSED as (in_dim, out_dim)."""
    kw, kb = jax.random.split(key)
    bound = 1.0 / np.sqrt(in_dim)
    weight_t = jax.random.uniform(kw, (in_dim, out_dim), jnp.float32, -bound, bound)
    bias = jax.random.uniform(kb, (out_dim,), jnp.float32, -bound, bound)
    return weight_t, bias


if __name__ == "__main__":
    key = jax.random.PRNGKey(0)
    k1, k2, k3, k4, k5, k6 = jax.random.split(key, 6)

    # ---- Test 1: no embedding, single-block fast path ---------------------------
    B, nb_nodes, input_dim, out_dim = 2, 16, 4, 2
    x = jax.random.normal(k1, (B, nb_nodes, input_dim), dtype=jnp.float32)

    # Symmetric adjacency, kept for parity with GraphNetwork.__init__ (only the
    # graph conv layers consume it, and those are not instantiable from the spec).
    adj = np.abs(np.asarray(jax.random.normal(k2, (nb_nodes, nb_nodes))))
    adj = adj + adj.T

    weight_t, bias = make_params(k3, nb_nodes * input_dim, out_dim)
    params1 = prepare_logistic_params(weight_t, bias)

    y = graph_network_forward(x, params1)
    y = jax.block_until_ready(y)
    assert y.shape == (B, out_dim)

    y_ref = (np.asarray(x, np.float64).reshape(B, -1)
             @ np.asarray(weight_t, np.float64) + np.asarray(bias, np.float64))
    np.testing.assert_allclose(np.asarray(y), y_ref, rtol=1e-3, atol=1e-4)

    # ---- Test 2: embedding folded into the weight, fast path --------------------
    B2, nb_nodes2, emb_size, out_dim2 = 4, 160, 8, 3
    x2 = jax.random.normal(k4, (B2, nb_nodes2, 1), dtype=jnp.float32)
    stdv = 1.0 / np.sqrt(emb_size)
    emb = jax.random.uniform(k5, (nb_nodes2, emb_size), jnp.float32, -stdv, stdv)
    weight_t2, bias2 = make_params(k6, nb_nodes2 * emb_size, out_dim2)
    params2 = prepare_logistic_params(weight_t2, bias2, emb=emb)

    y2 = graph_network_forward(x2, params2)
    y2 = jax.block_until_ready(y2)
    assert y2.shape == (B2, out_dim2)

    x2e = (np.asarray(x2, np.float64) * np.asarray(emb, np.float64)).reshape(B2, -1)
    y2_ref = x2e @ np.asarray(weight_t2, np.float64) + np.asarray(bias2, np.float64)
    np.testing.assert_allclose(np.asarray(y2), y2_ref, rtol=1e-3, atol=1e-4)

    # ---- Test 3: bf16 weight + forced tiled grid path (exercises the K-last
    #      reduction, in-place f32 output accumulation and Buffered(3) streams) ---
    params3 = prepare_logistic_params(weight_t2, bias2, emb=emb,
                                      weight_dtype=jnp.bfloat16)
    y3 = graph_network_forward(x2, params3,
                               max_single_block_bytes=0,       # force the grid path
                               tile_caps=(256, 256, 512))      # -> tk=256, gk=5
    y3 = jax.block_until_ready(y3)
    assert y3.shape == (B2, out_dim2)
    np.testing.assert_allclose(np.asarray(y3, np.float64), y2_ref,
                               rtol=2e-2, atol=1e-2)

    print("KERNEL_OK")
</pallas_src>

<mosaic_0001>
module attributes {stable_mosaic.version = 11 : i64} {
  func.func @_single_block_kernel(%arg0: memref<8x128xf32, #tpu.memory_space<vmem>>, %arg1: memref<128x128xf32, #tpu.memory_space<vmem>>, %arg2: memref<1x128xf32, #tpu.memory_space<vmem>>, %arg3: memref<8x128xf32, #tpu.memory_space<vmem>>) attributes {dimension_semantics = [], scalar_prefetch = 0 : i64, scratch_operands = 0 : i64, tpu.core_type = #tpu.core_type<tc>} {
    %c0 = arith.constant 0 : index
    %c0_0 = arith.constant 0 : index
    %0 = vector.load %arg0[%c0, %c0_0] : memref<8x128xf32, #tpu.memory_space<vmem>>, vector<8x128xf32>
    %c0_1 = arith.constant 0 : index
    %c0_2 = arith.constant 0 : index
    %1 = vector.load %arg1[%c0_1, %c0_2] : memref<128x128xf32, #tpu.memory_space<vmem>>, vector<128x128xf32>
    %cst = arith.constant dense<0.000000e+00> : vector<8x128xf32>
    %2 = tpu.matmul %0, %1, %cst {dimension_numbers = #tpu.dot_dimension_numbers<[1], [0], [0], [1], [0, 0, 1, 1], [], []>} : vector<8x128xf32>, vector<128x128xf32>, vector<8x128xf32> -> vector<8x128xf32>
    %c0_3 = arith.constant 0 : index
    %c0_4 = arith.constant 0 : index
    %3 = vector.load %arg2[%c0_3, %c0_4] : memref<1x128xf32, #tpu.memory_space<vmem>>, vector<1x128xf32>
    %4 = vector.broadcast %3 : vector<1x128xf32> to vector<8x128xf32>
    %5 = arith.addf %2, %4 : vector<8x128xf32>
    %c0_5 = arith.constant 0 : index
    %c0_6 = arith.constant 0 : index
    %6 = vector.load %arg3[%c0_5, %c0_6] : memref<8x128xf32, #tpu.memory_space<vmem>>, vector<8x128xf32>
    tpu.vector_store %arg3[%c0_5, %c0_6], %5 {strides = array<i32>} : memref<8x128xf32, #tpu.memory_space<vmem>>, vector<8x128xf32>,
    return
  }
}

</mosaic_0001>

<llo_original>
// kernel: tpu_custom_call.1
$region0: #{tpu_custom_call.1}
  #allocation0 [shape = 'u32[]', space=smem, size = 0x4, offset = 0x4, fixed_abs, tag = 'smem constant byte address 0x4 - core index']
  #allocation1 [shape = 'u32[72,128]{1,0:T(1,128)}', space=vmem, size = 0x9000, scoped, tag = 'internal scratch']
  %s0 = inlined_call_operand.hbm [shape: f32[8,128], index: 0, kind: input, shape index: {}]
  %s1 = inlined_call_operand.hbm [shape: f32[128,128], index: 1, kind: input, shape index: {}]
  %s2 = inlined_call_operand.vmem [shape: f32[1,128], index: 2, kind: input, shape index: {}]
  %s3 = inlined_call_operand.hbm [shape: f32[8,128], index: 3, kind: output, shape index: {}]
  %s4 = sld [smem:[#allocation0]]
  $region30: #{tpu_custom_call.1} parent=0
    _
  %s6 = ssub.s32 1, %s4
  %s7 = scalar_select 0, %s6, %s4
  $region1: #{tpu_custom_call.1} parent=0
    #allocation2 [shape = 'u8[4096]{0}', space=vmem, size = 0x1000, scoped, tag = 'input window, operand 0, single buffered']
    #allocation3 [shape = 's32[1]{0}', space=sflag, size = 0x4, scoped, tag = 'scoped memory for tpu_custom_call.1']
    #allocation4 [shape = 's32[1]{0}', space=sflag, size = 0x4, scoped, tag = 'scoped memory for tpu_custom_call.1']
    #allocation5 [shape = 'u8[65536]{0}', space=vmem, size = 0x10000, scoped, tag = 'input window, operand 1, single buffered']
    #allocation6 [shape = 's32[1]{0}', space=sflag, size = 0x4, scoped, tag = 'scoped memory for tpu_custom_call.1']
    #allocation7 [shape = 'u8[4096]{0}', space=vmem, size = 0x1000, scoped, tag = 'output window, operand 0, single buffered']
    %8 = vsyncpa [#allocation3], 0
    %9 = vsyncpa [#allocation6], 0
    %10 = vsyncpa [#allocation4], 0
    // Predicated region
    $region2: #{tpu_custom_call.1} parent=1 // pred_check
      _
    $region3: #{tpu_custom_call.1} parent=1 // pred_check_branch
      %12 = sbr.rel (0) target = $region5
    $region4: #{tpu_custom_call.1} parent=1 // pred_region
      %14 = vsyncadd [#allocation3], 0
      %s16 = sshll.u32 %s0, 4
      %s17 = int_to_ptr.hbm [resolvable:$true] %s16
      %s18 = sshll.u32 [#allocation2], 4
      %s19 = int_to_ptr.vmem [resolvable:$true] %s18
      %21 = dma.hbm_to_vmem [thread:$0]  %s17, 128, %s19, [#allocation3]
    $region5: #{tpu_custom_call.1} parent=1 // pred_fallthru
      _
    // Predicated region
    $region6: #{tpu_custom_call.1} parent=1 // pred_check
      _
    $region7: #{tpu_custom_call.1} parent=1 // pred_check_branch
      %23 = sbr.rel (0) target = $region9
    $region8: #{tpu_custom_call.1} parent=1 // pred_region
      %25 = vsyncadd [#allocation6], 0
      %s26 = sshll.u32 %s1, 4
      %s27 = int_to_ptr.hbm [resolvable:$true] %s26
      %s28 = sshll.u32 [#allocation5], 4
      %s29 = int_to_ptr.vmem [resolvable:$true] %s28
      %34 = dma.hbm_to_vmem [thread:$0]  %s27, 2048, %s29, [#allocation6], 128, 128, 8
    $region9: #{tpu_custom_call.1} parent=1 // pred_fallthru
      _
    // Predicated region
    $region10: #{tpu_custom_call.1} parent=1 // pred_check
      _
    $region11: #{tpu_custom_call.1} parent=1 // pred_check_branch
      %36 = sbr.rel (0) target = $region13
    $region12: #{tpu_custom_call.1} parent=1 // pred_region
      _
    $region13: #{tpu_custom_call.1} parent=1 // pred_fallthru
      _
    // Predicated region
    $region14: #{tpu_custom_call.1} parent=1 // pred_check
      _
    $region15: #{tpu_custom_call.1} parent=1 // pred_check_branch
      %38 = sbr.rel (0) target = $region17
    $region16: #{tpu_custom_call.1} parent=1 // pred_region
      %40 = dma.done [#allocation3], 128
    $region17: #{tpu_custom_call.1} parent=1 // pred_fallthru
      _
    // Predicated region
    $region18: #{tpu_custom_call.1} parent=1 // pred_check
      _
    $region19: #{tpu_custom_call.1} parent=1 // pred_check_branch
      %42 = sbr.rel (0) target = $region21
    $region20: #{tpu_custom_call.1} parent=1 // pred_region
      %44 = dma.done [#allocation6], 2048
    $region21: #{tpu_custom_call.1} parent=1 // pred_fallthru
      _
    %v45 = vld [vmem:[#allocation2] sm:$0xff]
    %v46 = vld [vmem:[#allocation5] sm:$0xff]
    %v47 = vld [vmem:[#allocation5 + $0x8] sm:$0xff]
    %v48 = vld [vmem:[#allocation5 + $0x10] sm:$0xff]
    %v49 = vld [vmem:[#allocation5 + $0x18] sm:$0xff]
    %v50 = vld [vmem:[#allocation5 + $0x20] sm:$0xff]
    %v51 = vld [vmem:[#allocation5 + $0x28] sm:$0xff]
    %v52 = vld [vmem:[#allocation5 + $0x30] sm:$0xff]
    %v53 = vld [vmem:[#allocation5 + $0x38] sm:$0xff]
    %v54 = vld [vmem:[#allocation5 + $0x40] sm:$0xff]
    %v55 = vld [vmem:[#allocation5 + $0x48] sm:$0xff]
    %v56 = vld [vmem:[#allocation5 + $0x50] sm:$0xff]
    %v57 = vld [vmem:[#allocation5 + $0x58] sm:$0xff]
    %v58 = vld [vmem:[#allocation5 + $0x60] sm:$0xff]
    %v59 = vld [vmem:[#allocation5 + $0x68] sm:$0xff]
    %v60 = vld [vmem:[#allocation5 + $0x70] sm:$0xff]
    %v61 = vld [vmem:[#allocation5 + $0x78] sm:$0xff]
    %v62 = vld [vmem:[%s2] sm:$0x1]
    %v64 = vperm.slane %v62, 0
    %66 = vmatpush.msra.mxu0 %v61
    %67 = vmatpush.msra.mxu0 %v60
    %68 = vmatpush.msra.mxu0 %v59
    %69 = vmatpush.msra.mxu0 %v58
    %70 = vmatpush.msra.mxu0 %v57
    %71 = vmatpush.msra.mxu0 %v56
    %72 = vmatpush.msra.mxu0 %v55
    %73 = vmatpush.msra.mxu0 %v54
    %74 = vmatpush.msra.mxu0 %v53
    %75 = vmatpush.msra.mxu0 %v52
    %76 = vmatpush.msra.mxu0 %v51
    %77 = vmatpush.msra.mxu0 %v50
    %78 = vmatpush.msra.mxu0 %v49
    %79 = vmatpush.msra.mxu0 %v48
    %80 = vmatpush.msra.mxu0 %v47
    %81 = vmatpush.msra.mxu0 %v46
    %82 = vmatmul.f32.gmra.mxu0 %v45
    %v83 = vpop.f32.mrf.mxu0
    %v84 = vadd.f32 %v64, %v83
    %85 = vdwg.mxu0
    %86 = vst [vmem:[#allocation7] sm:$0xff] %v84
    // Predicated region
    $region22: #{tpu_custom_call.1} parent=1 // pred_check
      _
    $region23: #{tpu_custom_call.1} parent=1 // pred_check_branch
      %88 = sbr.rel (0) target = $region25
    $region24: #{tpu_custom_call.1} parent=1 // pred_region
      %90 = vsyncadd [#allocation4], 0
      %s92 = sshll.u32 [#allocation7], 4
      %s93 = int_to_ptr.vmem [resolvable:$true] %s92
      %s94 = sshll.u32 %s3, 4
      %s95 = int_to_ptr.hbm [resolvable:$true] %s94
      %97 = dma.vmem_to_hbm [thread:$0]  %s93, 128, %s95, [#allocation4]
    $region25: #{tpu_custom_call.1} parent=1 // pred_fallthru
      _
    // Predicated region
    $region26: #{tpu_custom_call.1} parent=1 // pred_check
      _
    $region27: #{tpu_custom_call.1} parent=1 // pred_check_branch
      %99 = sbr.rel (0) target = $region29
    $region28: #{tpu_custom_call.1} parent=1 // pred_region
      %101 = dma.done [#allocation4], 128
    $region29: #{tpu_custom_call.1} parent=1 // pred_fallthru
      _
    %102 = vsyncpa [#allocation3], 1
    %103 = vsyncpa [#allocation6], 1
    %104 = vsyncpa [#allocation4], 1

</llo_original>
